<compile_context>
chip_gen: v5e
topology: v5e:2x2
jax: 0.10.0
libtpu: 0.0.40
codegen_flags: <defaults>
</compile_context>

<pallas_src>
import functools
import math

import jax
import jax.numpy as jnp
from jax.experimental import pallas as pl
from jax.experimental.pallas import tpu as pltpu


def rotate_kernel(x_ref, w_ref, o_ref):
    # x_ref: (tm, width) tile of packed input rows (stream dtype)
    # w_ref: (width, width) block-diagonal rotation matrix, resident in VMEM
    # o_ref: (tm, width) tile of packed output
    o_ref[...] = jnp.dot(
        x_ref[...], w_ref[...], preferred_element_type=jnp.float32
    ).astype(o_ref.dtype)


def _round_up(a, b):
    return ((a + b - 1) // b) * b


@functools.partial(jax.jit, static_argnames=("tm", "stream_bf16"))
def rotate_layer(x, weight, *, tm=2048, stream_bf16=False):
    """Apply y = x @ weight where weight is (n, n).

    x: (..., n) array; leading dims are flattened into rows.
    tm: requested row tile (in packed wide rows).
    stream_bf16: stream x / W / output in bfloat16 (f32 MXU accumulation).
        Halves HBM traffic; output dtype becomes bfloat16.
    """
    n = weight.shape[0]
    assert weight.shape == (n, n)

    stream_dtype = jnp.bfloat16 if stream_bf16 else weight.dtype
    out_dtype = stream_dtype
    align = 16 if jnp.dtype(stream_dtype) == jnp.bfloat16 else 8

    orig_shape = x.shape
    x2d = x.reshape(-1, n).astype(stream_dtype)
    M = x2d.shape[0]

    # Lane-dense packing factor: fold p rows of width n into one width-wide row
    # (width = lcm(n, 128), capped at 512) and multiply by kron(I_p, W).
    lcm = math.lcm(n, 128)
    if n < 128 and lcm <= 512:
        p = lcm // n
        width = lcm
    else:
        # TODO(synk): lane-sparse fallback (masked stores) for n that neither
        # reaches 128 nor packs to <=512 lanes; no fp8 x-stream path (v7x) yet.
        p = 1
        width = n

    # Pad only the few rows needed so rows pack evenly into width-wide rows
    # (no pad at all when M % p == 0).  The last grid block is ragged, so there
    # is no host-side pad-to-tile-multiple copy.
    mp = pl.cdiv(M, p)
    m_pack = mp * p
    if m_pack != M:
        x2d = jnp.pad(x2d, ((0, m_pack - M), (0, 0)))
    x_packed = x2d.reshape(mp, width)

    if p > 1:
        w_blk = jnp.kron(jnp.eye(p, dtype=stream_dtype), weight.astype(stream_dtype))
    else:
        w_blk = weight.astype(stream_dtype)

    # Row-tile selection: as big as requested, but capped so the "parallel"
    # grid axis has >= MIN_GRID steps whenever there is enough work (so both
    # v7x TensorCores participate).
    MIN_GRID = 4
    tm_eff = min(max(tm, align), _round_up(mp, align))
    tm_eff = _round_up(tm_eff, align)
    if mp >= MIN_GRID * align:
        tm_eff = min(tm_eff, _round_up(pl.cdiv(mp, MIN_GRID), align))
    if tm_eff >= mp:
        tm_eff = mp  # single block equal to the full array dims (always legal)
    grid_m = pl.cdiv(mp, tm_eff)

    in_itemsize = jnp.dtype(stream_dtype).itemsize
    out_itemsize = jnp.dtype(out_dtype).itemsize
    cost = pl.CostEstimate(
        flops=2 * mp * width * width,
        transcendentals=0,
        bytes_accessed=mp * width * (in_itemsize + out_itemsize)
        + width * width * in_itemsize,
    )
    # Double-buffered x/out tiles + resident W, with headroom.  Far below the
    # VMEM of every generation (v5e/v6e 128 MiB, v7x 64 MiB physical).
    vmem_need = (
        2 * tm_eff * width * (in_itemsize + out_itemsize)
        + 2 * width * width * in_itemsize
    )
    vmem_limit = int(min(max(2 * vmem_need, 16 * 1024 * 1024), 48 * 1024 * 1024))

    out = pl.pallas_call(
        rotate_kernel,
        out_shape=jax.ShapeDtypeStruct((mp, width), out_dtype),
        grid=(grid_m,),
        in_specs=[
            pl.BlockSpec((tm_eff, width), lambda i: (i, 0)),   # row tile of x
            pl.BlockSpec((width, width), lambda i: (0, 0)),    # resident W
        ],
        out_specs=pl.BlockSpec((tm_eff, width), lambda i: (i, 0)),
        compiler_params=pltpu.CompilerParams(
            dimension_semantics=("parallel",),
            vmem_limit_bytes=vmem_limit,
        ),
        cost_estimate=cost,
    )(x_packed, w_blk)

    # Unpack: undo the wide folding, drop any pad rows.
    out2d = out.reshape(m_pack, n)[:M]
    return out2d.reshape(orig_shape)


def make_orthogonal(key, n, dtype=jnp.float32):
    """Deterministic orthogonal init (mirrors torch.nn.init.orthogonal_)."""
    a = jax.random.normal(key, (n, n), dtype=jnp.float32)
    q, r = jnp.linalg.qr(a)
    d = jnp.sign(jnp.diagonal(r))
    q = q * d[None, :]
    return q.astype(dtype)


if __name__ == "__main__":
    key = jax.random.PRNGKey(0)
    k_w, k_x, k_x2, k_w2, k_x3 = jax.random.split(key, 5)

    n = 32          # hidden dim (square rotation matrix is n x n)
    batch, seq = 2, 8

    weight = make_orthogonal(k_w, n)                           # (32, 32) orthogonal
    x = jax.random.normal(k_x, (batch, seq, n), jnp.float32)   # (2, 8, 32)

    y = jax.block_until_ready(rotate_layer(x, weight))
    y_ref = jnp.matmul(x.astype(weight.dtype), weight)
    assert y.shape == x.shape
    assert jnp.allclose(y, y_ref, atol=1e-5, rtol=1e-5)

    # Multi-step grid + ragged last block (M=2100 packs cleanly -> no jnp.pad).
    x_big = jax.random.normal(k_x2, (3, 700, n), jnp.float32)
    y_big = jax.block_until_ready(rotate_layer(x_big, weight))
    y_big_ref = jnp.matmul(x_big, weight)
    assert y_big.shape == x_big.shape
    assert jnp.allclose(y_big, y_big_ref, atol=1e-5, rtol=1e-5)

    # bf16 streaming path: ~2x less HBM traffic, relaxed tolerance.
    y_bf16 = jax.block_until_ready(rotate_layer(x_big, weight, stream_bf16=True))
    assert y_bf16.dtype == jnp.bfloat16
    assert jnp.allclose(y_bf16.astype(jnp.float32), y_big_ref, atol=5e-2, rtol=5e-2)

    # Hidden size that does not divide 128: packs to width = lcm(48,128) = 384,
    # plus a small row pad (M=100 is not a multiple of p=8).
    n2 = 48
    weight2 = make_orthogonal(k_w2, n2)
    x3 = jax.random.normal(k_x3, (2, 50, n2), jnp.float32)
    y3 = jax.block_until_ready(rotate_layer(x3, weight2))
    y3_ref = jnp.matmul(x3, weight2)
    assert y3.shape == x3.shape
    assert jnp.allclose(y3, y3_ref, atol=1e-5, rtol=1e-5)

    print("KERNEL_OK")
</pallas_src>

<mosaic_0001>
module attributes {stable_mosaic.version = 11 : i64} {
  func.func @rotate_kernel(%arg0: i32, %arg1: memref<4x128xf32, #tpu.memory_space<vmem>>, %arg2: memref<128x128xf32, #tpu.memory_space<vmem>>, %arg3: memref<4x128xf32, #tpu.memory_space<vmem>>) attributes {dimension_semantics = [#tpu.dimension_semantics<parallel>], iteration_bounds = array<i64: 1>, scalar_prefetch = 0 : i64, scratch_operands = 0 : i64, tpu.core_type = #tpu.core_type<tc>, window_params = [{transform_indices = @transform_0, window_bounds = array<i64: 4, 128>}, {pipeline_mode = #tpu.pipeline_mode<synchronous>, transform_indices = @transform_1, window_bounds = array<i64: 128, 128>}, {transform_indices = @transform_2, window_bounds = array<i64: 4, 128>}]} {
    %c0 = arith.constant 0 : index
    %c0_0 = arith.constant 0 : index
    %0 = vector.load %arg1[%c0, %c0_0] : memref<4x128xf32, #tpu.memory_space<vmem>>, vector<4x128xf32>
    %c0_1 = arith.constant 0 : index
    %c0_2 = arith.constant 0 : index
    %1 = vector.load %arg2[%c0_1, %c0_2] : memref<128x128xf32, #tpu.memory_space<vmem>>, vector<128x128xf32>
    %cst = arith.constant dense<0.000000e+00> : vector<4x128xf32>
    %2 = tpu.matmul %0, %1, %cst {dimension_numbers = #tpu.dot_dimension_numbers<[1], [0], [0], [1], [0, 0, 1, 1], [], []>} : vector<4x128xf32>, vector<128x128xf32>, vector<4x128xf32> -> vector<4x128xf32>
    %c0_3 = arith.constant 0 : index
    %c0_4 = arith.constant 0 : index
    %3 = vector.load %arg3[%c0_3, %c0_4] : memref<4x128xf32, #tpu.memory_space<vmem>>, vector<4x128xf32>
    tpu.vector_store %arg3[%c0_3, %c0_4], %2 {strides = array<i32>} : memref<4x128xf32, #tpu.memory_space<vmem>>, vector<4x128xf32>,
    return
  }
  func.func @transform_0(%arg0: i32) -> (i32, i32) {
    %c0_i32 = arith.constant 0 : i32
    %c0_i32_0 = arith.constant 0 : i32
    return %arg0, %c0_i32 : i32, i32
  }
  func.func @transform_1(%arg0: i32) -> (i32, i32) {
    %c0_i32 = arith.constant 0 : i32
    %c0_i32_0 = arith.constant 0 : i32
    %c0_i32_1 = arith.constant 0 : i32
    return %c0_i32, %c0_i32_0 : i32, i32
  }
  func.func @transform_2(%arg0: i32) -> (i32, i32) {
    %c0_i32 = arith.constant 0 : i32
    %c0_i32_0 = arith.constant 0 : i32
    return %arg0, %c0_i32 : i32, i32
  }
}

</mosaic_0001>

<llo_original>
// kernel: rotate_layer.1
$region0: #{rotate_layer.1}
  #allocation0 [shape = 'u32[]', space=smem, size = 0x4, offset = 0x4, fixed_abs, tag = 'smem constant byte address 0x4 - core index']
  #allocation1 [shape = 'u32[72,128]{1,0:T(1,128)}', space=vmem, size = 0x9000, scoped, tag = 'internal scratch']
  %s0 = inlined_call_operand.vmem [shape: f32[4,128], index: 0, kind: input, shape index: {}]
  %s1 = inlined_call_operand.vmem [shape: f32[128,128], index: 1, kind: input, shape index: {}]
  %s2 = inlined_call_operand.vmem [shape: f32[4,128], index: 2, kind: output, shape index: {}]
  %s3 = sld [smem:[#allocation0]]
  $region18: #{rotate_layer.1} parent=0
    _
  %s5 = ssub.s32 1, %s3
  %s6 = scalar_select 0, %s5, %s3
  // Predicated region
  $region2: #{rotate_layer.1} parent=0 // pred_check
    _
  $region3: #{rotate_layer.1} parent=0 // pred_check_branch
    %8 = sbr.rel (0) target = $region5
  $region4: #{rotate_layer.1} parent=0 // pred_region
    _
  $region5: #{rotate_layer.1} parent=0 // pred_fallthru
    _
  // Predicated region
  $region6: #{rotate_layer.1} parent=0 // pred_check
    _
  $region7: #{rotate_layer.1} parent=0 // pred_check_branch
    %10 = sbr.rel (0) target = $region9
  $region8: #{rotate_layer.1} parent=0 // pred_region
    _
  $region9: #{rotate_layer.1} parent=0 // pred_fallthru
    _
  %v11 = vld [vmem:[%s0] sm:$0xf]
  %v12 = vld [vmem:[%s1] sm:$0xff]
  %v13 = vld [vmem:[%s1 + $0x8] sm:$0xff]
  %v14 = vld [vmem:[%s1 + $0x10] sm:$0xff]
  %v15 = vld [vmem:[%s1 + $0x18] sm:$0xff]
  %v16 = vld [vmem:[%s1 + $0x20] sm:$0xff]
  %v17 = vld [vmem:[%s1 + $0x28] sm:$0xff]
  %v18 = vld [vmem:[%s1 + $0x30] sm:$0xff]
  %v19 = vld [vmem:[%s1 + $0x38] sm:$0xff]
  %v20 = vld [vmem:[%s1 + $0x40] sm:$0xff]
  %v21 = vld [vmem:[%s1 + $0x48] sm:$0xff]
  %v22 = vld [vmem:[%s1 + $0x50] sm:$0xff]
  %v23 = vld [vmem:[%s1 + $0x58] sm:$0xff]
  %v24 = vld [vmem:[%s1 + $0x60] sm:$0xff]
  %v25 = vld [vmem:[%s1 + $0x68] sm:$0xff]
  %v26 = vld [vmem:[%s1 + $0x70] sm:$0xff]
  %v27 = vld [vmem:[%s1 + $0x78] sm:$0xff]
  %28 = vmatpush.msra.mxu0 %v27
  %29 = vmatpush.msra.mxu0 %v26
  %30 = vmatpush.msra.mxu0 %v25
  %31 = vmatpush.msra.mxu0 %v24
  %32 = vmatpush.msra.mxu0 %v23
  %33 = vmatpush.msra.mxu0 %v22
  %34 = vmatpush.msra.mxu0 %v21
  %35 = vmatpush.msra.mxu0 %v20
  %36 = vmatpush.msra.mxu0 %v19
  %37 = vmatpush.msra.mxu0 %v18
  %38 = vmatpush.msra.mxu0 %v17
  %39 = vmatpush.msra.mxu0 %v16
  %40 = vmatpush.msra.mxu0 %v15
  %41 = vmatpush.msra.mxu0 %v14
  %42 = vmatpush.msra.mxu0 %v13
  %43 = vmatpush.msra.mxu0 %v12
  %44 = vmatmul.f32.gmra.mxu0 %v11
  %v45 = vpop.f32.mrf.mxu0
  %v46 = vadd.f32 0.0, %v45
  %47 = vdwg.mxu0
  %48 = vst [vmem:[%s2] sm:$0xf] %v46
  // Predicated region
  $region10: #{rotate_layer.1} parent=0 // pred_check
    _
  $region11: #{rotate_layer.1} parent=0 // pred_check_branch
    %50 = sbr.rel (0) target = $region13
  $region12: #{rotate_layer.1} parent=0 // pred_region
    _
  $region13: #{rotate_layer.1} parent=0 // pred_fallthru
    _
  // Predicated region
  $region14: #{rotate_layer.1} parent=0 // pred_check
    _
  $region15: #{rotate_layer.1} parent=0 // pred_check_branch
    %52 = sbr.rel (0) target = $region17
  $region16: #{rotate_layer.1} parent=0 // pred_region
    _
  $region17: #{rotate_layer.1} parent=0 // pred_fallthru
    _

</llo_original>
